<compile_context>
chip_gen: v5e
topology: v5e:2x2
jax: 0.10.0
libtpu: 0.0.40
codegen_flags: <defaults>
</compile_context>

<pallas_src>
import functools

import jax
import jax.numpy as jnp
from jax import lax
from jax.experimental import pallas as pl
from jax.experimental.pallas import tpu as pltpu


def _round_up(n, m):
    return ((n + m - 1) // m) * m


def _cdiv(a, b):
    return -(-a // b)


# ----------------------------------------------------------------------------
# Kernel
# ----------------------------------------------------------------------------
def _mlp_kernel(x_ref, w_ref, b_ref, o_ref):
    """Fused 4-layer MLP for one batch tile; activations batch-on-lanes.

    x_ref: (TB, D) f32                 o_ref: (1, TB) f32
    w_ref: (200, WPAD) mxu_dtype       rows [0:128]   = W1[:, :D]
                                       rows [128:192] = W2 (64, 128)
                                       rows [192:200] = W3[:, :64]
    b_ref: (128, 8) f32                cols 0..4 = b1, b2, b3, w4, b4
    """
    mxu_dtype = w_ref.dtype
    d = x_ref.shape[1]

    xt = x_ref[...].astype(mxu_dtype)                        # (TB, D), tiny cast

    # layer 1: (128, D) . (TB, D) contracted over D -> (128, TB); the small
    # (TB, D) transpose is handled on the MXU feed / XLU path in-kernel.
    w1 = w_ref[0:128, 0:d]
    h = lax.dot_general(w1, xt, dimension_numbers=(((1,), (1,)), ((), ())),
                        preferred_element_type=jnp.float32)
    h = jnp.maximum(h + b_ref[:, 0:1], 0.0)                  # (128, TB) f32

    # layer 2: (64, 128) @ (128, TB) -> (64, TB)
    h = jnp.dot(w_ref[128:192, 0:128], h.astype(mxu_dtype),
                preferred_element_type=jnp.float32)
    h = jnp.maximum(h + b_ref[0:64, 1:2], 0.0)

    # layer 3: (8, 64) @ (64, TB) -> (8, TB)  (MXU has slack; keep the cast)
    h = jnp.dot(w_ref[192:200, 0:64], h.astype(mxu_dtype),
                preferred_element_type=jnp.float32)
    h = jnp.maximum(h + b_ref[0:8, 2:3], 0.0)

    # layer 4 on VPU + XLU: scale the 8 rows by w4 and reduce over sublanes.
    h4 = jnp.sum(h * b_ref[0:8, 3:4], axis=0, keepdims=True) + b_ref[0:1, 4:5]

    o_ref[...] = jnp.tanh(h4).astype(o_ref.dtype)            # lane-dense store


# ----------------------------------------------------------------------------
# Generation-aware tiling
# ----------------------------------------------------------------------------
def _tpu_traits():
    """(num_tensorcores_per_device, tile_b_cap) for the attached TPU."""
    try:
        kind = jax.devices()[0].device_kind.lower()
    except Exception:
        kind = ""
    if "v5 lite" in kind or "v5e" in kind:
        return 1, 256    # 1 TC; 1 vst slot -> keep the (128, TB) f32 act small
    if "v6" in kind:
        return 1, 512    # 1 TC (Trillium)
    if "7" in kind:
        return 2, 1024   # 2 TCs/chip; fast HBM -> amortize per-step overhead
    if "v4" in kind or "v5" in kind:
        return 2, 512    # megacore parts
    return 1, 512


def _pick_tiling(batch):
    """Return (tile_b, num_grid_steps) for this batch on the attached TPU."""
    n_tc, cap = _tpu_traits()
    b128 = _round_up(max(batch, 1), 128)
    if n_tc <= 1 or b128 <= 128:
        tile_b = min(b128, cap)                               # 1 step if it fits
    else:
        tile_b = min(cap, _round_up(_cdiv(b128, 2), 128))     # aim for 2 steps
    steps = _cdiv(batch, tile_b)
    if n_tc >= 2 and steps > 1 and steps % 2 == 1:
        steps += 1                                            # keep both TCs busy
    return tile_b, steps


# ----------------------------------------------------------------------------
# Parameter packing (do once, outside the per-call path)
# ----------------------------------------------------------------------------
def pack_params(params, mxu_dtype=jnp.bfloat16):
    """Pack 8 PyTorch-layout tensors (W:(out,in), b:(out,)) into two blobs.

    Returns (weight_blob (200, max(128, roundup(D,128))) mxu_dtype,
             bias_blob   (128, 8) float32).
    mxu_dtype=float32 is for correctness checks only (slower MXU path).
    """
    w1, b1, w2, b2, w3, b3, w4, b4 = params
    d = w1.shape[1]
    wpad = max(128, _round_up(d, 128))
    wblob = jnp.zeros((200, wpad), mxu_dtype)
    wblob = wblob.at[0:128, 0:d].set(w1.astype(mxu_dtype))
    wblob = wblob.at[128:192, 0:128].set(w2.astype(mxu_dtype))
    wblob = wblob.at[192:200, 0:64].set(w3.astype(mxu_dtype))

    bblob = jnp.zeros((128, 8), jnp.float32)
    bblob = bblob.at[:, 0].set(b1.astype(jnp.float32))
    bblob = bblob.at[0:64, 1].set(b2.astype(jnp.float32))
    bblob = bblob.at[0:8, 2].set(b3.astype(jnp.float32))
    bblob = bblob.at[0:8, 3].set(w4.reshape(-1).astype(jnp.float32))
    bblob = bblob.at[0:1, 4].set(b4.reshape(-1).astype(jnp.float32))
    return wblob, bblob


# ----------------------------------------------------------------------------
# Forward
# ----------------------------------------------------------------------------
@functools.partial(jax.jit, static_argnames=("tile_b", "b_pad"))
def _forward_impl(x, wblob, bblob, *, tile_b, b_pad):
    B, D = x.shape
    if b_pad != B:
        # Only when the tile doesn't divide the batch; padded rows produce
        # garbage columns that are sliced off below (do not remove the slice).
        x = jnp.pad(x, ((0, b_pad - B), (0, 0)))

    itemsize = jnp.dtype(wblob.dtype).itemsize
    cost = pl.CostEstimate(
        flops=2 * b_pad * (D * 128 + 128 * 64 + 64 * 8 + 8),
        transcendentals=b_pad,
        bytes_accessed=(b_pad * D * x.dtype.itemsize + b_pad * 4
                        + wblob.size * itemsize + bblob.size * 4),
    )

    out = pl.pallas_call(
        _mlp_kernel,
        out_shape=jax.ShapeDtypeStruct((1, b_pad), jnp.float32),
        grid_spec=pltpu.PrefetchScalarGridSpec(
            num_scalar_prefetch=0,
            grid=(b_pad // tile_b,),
            in_specs=[
                pl.BlockSpec((tile_b, D), lambda i: (i, 0)),   # x, native layout
                pl.BlockSpec(wblob.shape, lambda i: (0, 0)),   # weights, resident
                pl.BlockSpec(bblob.shape, lambda i: (0, 0)),   # biases,  resident
            ],
            out_specs=pl.BlockSpec((1, tile_b), lambda i: (0, i)),
        ),
        compiler_params=pltpu.CompilerParams(
            dimension_semantics=("parallel",)),
        cost_estimate=cost,
    )(x, wblob, bblob)

    return out[0, :B].reshape(B, 1)


def h_prediction_forward(x, packed_params, *, tile_b=None):
    """x: (B, input_dim) float32; packed_params from pack_params().
    Returns (B, 1) float32."""
    B = x.shape[0]
    if tile_b is None:
        tile_b, steps = _pick_tiling(B)
    else:
        steps = _cdiv(B, tile_b)
    wblob, bblob = packed_params
    return _forward_impl(x, wblob, bblob, tile_b=tile_b, b_pad=steps * tile_b)


# ----------------------------------------------------------------------------
# Reference / init
# ----------------------------------------------------------------------------
def init_params(input_dim, key):
    """PyTorch-Linear-style init, PyTorch layout: W (out, in), b (out,)."""
    dims = [(input_dim, 128), (128, 64), (64, 8), (8, 1)]
    params = []
    for fan_in, fan_out in dims:
        key, kw, kb = jax.random.split(key, 3)
        bound = 1.0 / jnp.sqrt(float(fan_in))
        w = jax.random.uniform(kw, (fan_out, fan_in), jnp.float32, -bound, bound)
        b = jax.random.uniform(kb, (fan_out,), jnp.float32, -bound, bound)
        params += [w, b]
    return tuple(params)


def reference_forward(x, params):
    """Plain-JAX f32 reference (PyTorch semantics) for correctness checks."""
    w1, b1, w2, b2, w3, b3, w4, b4 = params
    h = jnp.maximum(x @ w1.T + b1, 0.0)
    h = jnp.maximum(h @ w2.T + b2, 0.0)
    h = jnp.maximum(h @ w3.T + b3, 0.0)
    return jnp.tanh(h @ w4.T + b4)


if __name__ == "__main__":
    key = jax.random.PRNGKey(0)
    key, kx, kp = jax.random.split(key, 3)

    batch, input_dim = 8, 16
    x = jax.random.normal(kx, (batch, input_dim), jnp.float32)
    params = init_params(input_dim, kp)
    ref = reference_forward(x, params)

    # Fast path: bf16 MXU feed, f32 accumulation / biases (loose tolerance).
    packed_bf16 = pack_params(params, jnp.bfloat16)
    out = jax.block_until_ready(h_prediction_forward(x, packed_bf16))
    assert out.shape == (batch, 1)
    assert jnp.allclose(out, ref, atol=5e-2, rtol=0), "bf16 mismatch vs reference"

    # f32 feed: bit-tight correctness check (not the performance path).
    packed_f32 = pack_params(params, jnp.float32)
    out_f32 = jax.block_until_ready(h_prediction_forward(x, packed_f32))
    assert jnp.allclose(out_f32, ref, atol=1e-5, rtol=1e-5), "f32 mismatch vs reference"

    # Larger, non-multiple batch: exercises padding + multi-step parallel grid.
    xb = jax.random.normal(key, (1000, input_dim), jnp.float32)
    outb = jax.block_until_ready(h_prediction_forward(xb, packed_bf16))
    assert outb.shape == (1000, 1)
    assert jnp.allclose(outb, reference_forward(xb, params), atol=5e-2, rtol=0)

    print("KERNEL_OK")
</pallas_src>

<mosaic_0001>
module attributes {stable_mosaic.version = 11 : i64} {
  func.func @_mlp_kernel(%arg0: i32, %arg1: memref<128x16xf32, #tpu.memory_space<vmem>>, %arg2: memref<200x128xbf16, #tpu.memory_space<vmem>>, %arg3: memref<128x8xf32, #tpu.memory_space<vmem>>, %arg4: memref<1x128xf32, #tpu.memory_space<vmem>>) attributes {dimension_semantics = [#tpu.dimension_semantics<parallel>], iteration_bounds = array<i64: 1>, scalar_prefetch = 0 : i64, scratch_operands = 0 : i64, tpu.core_type = #tpu.core_type<tc>, window_params = [{transform_indices = @transform_0, window_bounds = array<i64: 128, 16>}, {pipeline_mode = #tpu.pipeline_mode<synchronous>, transform_indices = @transform_1, window_bounds = array<i64: 200, 128>}, {pipeline_mode = #tpu.pipeline_mode<synchronous>, transform_indices = @transform_2, window_bounds = array<i64: 128, 8>}, {transform_indices = @transform_3, window_bounds = array<i64: 1, 128>}]} {
    %c0 = arith.constant 0 : index
    %c0_0 = arith.constant 0 : index
    %0 = vector.load %arg1[%c0, %c0_0] : memref<128x16xf32, #tpu.memory_space<vmem>>, vector<128x16xf32>
    %1 = arith.truncf %0 : vector<128x16xf32> to vector<128x16xbf16>
    %c0_1 = arith.constant 0 : index
    %c0_2 = arith.constant 0 : index
    %2 = vector.load %arg2[%c0_1, %c0_2] : memref<200x128xbf16, #tpu.memory_space<vmem>>, vector<128x16xbf16>
    %cst = arith.constant dense<0.000000e+00> : vector<128x128xf32>
    %3 = tpu.matmul %2, %1, %cst {dimension_numbers = #tpu.dot_dimension_numbers<[1], [1], [0], [0], [0, 0, 1, 0], [], []>} : vector<128x16xbf16>, vector<128x16xbf16>, vector<128x128xf32> -> vector<128x128xf32>
    %c0_3 = arith.constant 0 : index
    %c0_4 = arith.constant 0 : index
    %4 = vector.load %arg3[%c0_3, %c0_4] : memref<128x8xf32, #tpu.memory_space<vmem>>, vector<128x1xf32>
    %5 = vector.broadcast %4 : vector<128x1xf32> to vector<128x128xf32>
    %6 = arith.addf %3, %5 : vector<128x128xf32>
    %cst_5 = arith.constant 0.000000e+00 : f32
    %7 = vector.broadcast %cst_5 : f32 to vector<128x128xf32>
    %8 = arith.maximumf %6, %7 : vector<128x128xf32>
    %c128 = arith.constant 128 : index
    %c0_6 = arith.constant 0 : index
    %9 = vector.load %arg2[%c128, %c0_6] : memref<200x128xbf16, #tpu.memory_space<vmem>>, vector<64x128xbf16>
    %10 = arith.truncf %8 : vector<128x128xf32> to vector<128x128xbf16>
    %cst_7 = arith.constant dense<0.000000e+00> : vector<64x128xf32>
    %11 = tpu.matmul %9, %10, %cst_7 {dimension_numbers = #tpu.dot_dimension_numbers<[1], [0], [0], [1], [0, 0, 1, 1], [], []>} : vector<64x128xbf16>, vector<128x128xbf16>, vector<64x128xf32> -> vector<64x128xf32>
    %c0_8 = arith.constant 0 : index
    %c1 = arith.constant 1 : index
    %12 = vector.load %arg3[%c0_8, %c1] : memref<128x8xf32, #tpu.memory_space<vmem>>, vector<64x1xf32>
    %13 = vector.broadcast %12 : vector<64x1xf32> to vector<64x128xf32>
    %14 = arith.addf %11, %13 : vector<64x128xf32>
    %cst_9 = arith.constant 0.000000e+00 : f32
    %15 = vector.broadcast %cst_9 : f32 to vector<64x128xf32>
    %16 = arith.maximumf %14, %15 : vector<64x128xf32>
    %c192 = arith.constant 192 : index
    %c0_10 = arith.constant 0 : index
    %17 = vector.load %arg2[%c192, %c0_10] : memref<200x128xbf16, #tpu.memory_space<vmem>>, vector<8x64xbf16>
    %18 = arith.truncf %16 : vector<64x128xf32> to vector<64x128xbf16>
    %cst_11 = arith.constant dense<0.000000e+00> : vector<8x128xf32>
    %19 = tpu.matmul %17, %18, %cst_11 {dimension_numbers = #tpu.dot_dimension_numbers<[1], [0], [0], [1], [0, 0, 1, 1], [], []>} : vector<8x64xbf16>, vector<64x128xbf16>, vector<8x128xf32> -> vector<8x128xf32>
    %c0_12 = arith.constant 0 : index
    %c2 = arith.constant 2 : index
    %20 = vector.load %arg3[%c0_12, %c2] : memref<128x8xf32, #tpu.memory_space<vmem>>, vector<8x1xf32>
    %21 = vector.broadcast %20 : vector<8x1xf32> to vector<8x128xf32>
    %22 = arith.addf %19, %21 : vector<8x128xf32>
    %cst_13 = arith.constant 0.000000e+00 : f32
    %23 = vector.broadcast %cst_13 : f32 to vector<8x128xf32>
    %24 = arith.maximumf %22, %23 : vector<8x128xf32>
    %c0_14 = arith.constant 0 : index
    %c3 = arith.constant 3 : index
    %25 = vector.load %arg3[%c0_14, %c3] : memref<128x8xf32, #tpu.memory_space<vmem>>, vector<8x1xf32>
    %26 = vector.broadcast %25 : vector<8x1xf32> to vector<8x128xf32>
    %27 = arith.mulf %24, %26 : vector<8x128xf32>
    %cst_15 = arith.constant dense<0.000000e+00> : vector<128xf32>
    %28 = vector.multi_reduction <add>, %27, %cst_15 [0] : vector<8x128xf32> to vector<128xf32>
    %29 = vector.shape_cast %28 : vector<128xf32> to vector<1x128xf32>
    %c0_16 = arith.constant 0 : index
    %c4 = arith.constant 4 : index
    %30 = vector.load %arg3[%c0_16, %c4] : memref<128x8xf32, #tpu.memory_space<vmem>>, vector<1x1xf32>
    %31 = vector.broadcast %30 : vector<1x1xf32> to vector<1x128xf32>
    %32 = arith.addf %29, %31 : vector<1x128xf32>
    %33 = math.tanh %32 : vector<1x128xf32>
    %c0_17 = arith.constant 0 : index
    %c0_18 = arith.constant 0 : index
    %34 = vector.load %arg4[%c0_17, %c0_18] : memref<1x128xf32, #tpu.memory_space<vmem>>, vector<1x128xf32>
    tpu.vector_store %arg4[%c0_17, %c0_18], %33 {strides = array<i32>} : memref<1x128xf32, #tpu.memory_space<vmem>>, vector<1x128xf32>,
    return
  }
  func.func @transform_0(%arg0: i32) -> (i32, i32) {
    %c0_i32 = arith.constant 0 : i32
    %c0_i32_0 = arith.constant 0 : i32
    return %arg0, %c0_i32 : i32, i32
  }
  func.func @transform_1(%arg0: i32) -> (i32, i32) {
    %c0_i32 = arith.constant 0 : i32
    %c0_i32_0 = arith.constant 0 : i32
    %c0_i32_1 = arith.constant 0 : i32
    return %c0_i32, %c0_i32_0 : i32, i32
  }
  func.func @transform_2(%arg0: i32) -> (i32, i32) {
    %c0_i32 = arith.constant 0 : i32
    %c0_i32_0 = arith.constant 0 : i32
    %c0_i32_1 = arith.constant 0 : i32
    return %c0_i32, %c0_i32_0 : i32, i32
  }
  func.func @transform_3(%arg0: i32) -> (i32, i32) {
    %c0_i32 = arith.constant 0 : i32
    %c0_i32_0 = arith.constant 0 : i32
    return %c0_i32, %arg0 : i32, i32
  }
}

</mosaic_0001>

<llo_original>
// kernel: _forward_impl.1
$region0: #{_forward_impl.1}
  #allocation0 [shape = 'u32[]', space=smem, size = 0x4, offset = 0x4, fixed_abs, tag = 'smem constant byte address 0x4 - core index']
  #allocation1 [shape = 'u32[72,128]{1,0:T(1,128)}', space=vmem, size = 0x9000, scoped, tag = 'internal scratch']
  %s0 = inlined_call_operand.vmem [shape: f32[128,16], index: 0, kind: input, shape index: {}]
  %s1 = inlined_call_operand.vmem [shape: bf16[200,128], index: 1, kind: input, shape index: {}]
  %s2 = inlined_call_operand.vmem [shape: f32[128,8], index: 2, kind: input, shape index: {}]
  %s3 = inlined_call_operand.vmem [shape: f32[1,128], index: 3, kind: output, shape index: {}]
  %s4 = sld [smem:[#allocation0]]
  $region22: #{_forward_impl.1} parent=0
    _
  %s6 = ssub.s32 1, %s4
  %s7 = scalar_select 0, %s6, %s4
  // Predicated region
  $region2: #{_forward_impl.1} parent=0 // pred_check
    _
  $region3: #{_forward_impl.1} parent=0 // pred_check_branch
    %9 = sbr.rel (0) target = $region5
  $region4: #{_forward_impl.1} parent=0 // pred_region
    _
  $region5: #{_forward_impl.1} parent=0 // pred_fallthru
    _
  // Predicated region
  $region6: #{_forward_impl.1} parent=0 // pred_check
    _
  $region7: #{_forward_impl.1} parent=0 // pred_check_branch
    %11 = sbr.rel (0) target = $region9
  $region8: #{_forward_impl.1} parent=0 // pred_region
    _
  $region9: #{_forward_impl.1} parent=0 // pred_fallthru
    _
  // Predicated region
  $region10: #{_forward_impl.1} parent=0 // pred_check
    _
  $region11: #{_forward_impl.1} parent=0 // pred_check_branch
    %13 = sbr.rel (0) target = $region13
  $region12: #{_forward_impl.1} parent=0 // pred_region
    _
  $region13: #{_forward_impl.1} parent=0 // pred_fallthru
    _
  %v15 = vld [vmem:[%s0] sm:$0xff]
  %v16 = vld [vmem:[%s0 + $0x8] sm:$0xff]
  %v17 = vld [vmem:[%s0 + $0x10] sm:$0xff]
  %v18 = vld [vmem:[%s0 + $0x18] sm:$0xff]
  %v19 = vld [vmem:[%s0 + $0x20] sm:$0xff]
  %v20 = vld [vmem:[%s0 + $0x28] sm:$0xff]
  %v21 = vld [vmem:[%s0 + $0x30] sm:$0xff]
  %v22 = vld [vmem:[%s0 + $0x38] sm:$0xff]
  %v23 = vld [vmem:[%s0 + $0x40] sm:$0xff]
  %v24 = vld [vmem:[%s0 + $0x48] sm:$0xff]
  %v25 = vld [vmem:[%s0 + $0x50] sm:$0xff]
  %v26 = vld [vmem:[%s0 + $0x58] sm:$0xff]
  %v27 = vld [vmem:[%s0 + $0x60] sm:$0xff]
  %v28 = vld [vmem:[%s0 + $0x68] sm:$0xff]
  %v29 = vld [vmem:[%s0 + $0x70] sm:$0xff]
  %v30 = vld [vmem:[%s0 + $0x78] sm:$0xff]
  %v31 = vpack.c.bf16 %v16, %v15
  %v32 = vpack.c.bf16 %v18, %v17
  %v33 = vpack.c.bf16 %v20, %v19
  %v34 = vpack.c.bf16 %v22, %v21
  %v35 = vpack.c.bf16 %v24, %v23
  %v36 = vpack.c.bf16 %v26, %v25
  %v37 = vpack.c.bf16 %v28, %v27
  %v38 = vpack.c.bf16 %v30, %v29
  %v39 = vld [vmem:[%s1] sm:$0xf]
  %v40 = vld [vmem:[%s1 + $0x4] sm:$0xf]
  %v41 = vld [vmem:[%s1 + $0x8] sm:$0xf]
  %v42 = vld [vmem:[%s1 + $0xc] sm:$0xf]
  %v43 = vld [vmem:[%s1 + $0x10] sm:$0xf]
  %v44 = vld [vmem:[%s1 + $0x14] sm:$0xf]
  %v45 = vld [vmem:[%s1 + $0x18] sm:$0xf]
  %v46 = vld [vmem:[%s1 + $0x1c] sm:$0xf]
  %v47 = vld [vmem:[%s1 + $0x20] sm:$0xf]
  %v48 = vld [vmem:[%s1 + $0x24] sm:$0xf]
  %v49 = vld [vmem:[%s1 + $0x28] sm:$0xf]
  %v50 = vld [vmem:[%s1 + $0x2c] sm:$0xf]
  %v51 = vld [vmem:[%s1 + $0x30] sm:$0xf]
  %v52 = vld [vmem:[%s1 + $0x34] sm:$0xf]
  %v53 = vld [vmem:[%s1 + $0x38] sm:$0xf]
  %v54 = vld [vmem:[%s1 + $0x3c] sm:$0xf]
  %v55 = vld [vmem:[%s2] sm:$0xff]
  %v56 = vld [vmem:[%s2 + $0x8] sm:$0xff]
  %v57 = vld [vmem:[%s2 + $0x10] sm:$0xff]
  %v58 = vld [vmem:[%s2 + $0x18] sm:$0xff]
  %v59 = vld [vmem:[%s2 + $0x20] sm:$0xff]
  %v60 = vld [vmem:[%s2 + $0x28] sm:$0xff]
  %v61 = vld [vmem:[%s2 + $0x30] sm:$0xff]
  %v62 = vld [vmem:[%s2 + $0x38] sm:$0xff]
  %v63 = vld [vmem:[%s2 + $0x40] sm:$0xff]
  %v64 = vld [vmem:[%s2 + $0x48] sm:$0xff]
  %v65 = vld [vmem:[%s2 + $0x50] sm:$0xff]
  %v66 = vld [vmem:[%s2 + $0x58] sm:$0xff]
  %v67 = vld [vmem:[%s2 + $0x60] sm:$0xff]
  %v68 = vld [vmem:[%s2 + $0x68] sm:$0xff]
  %v69 = vld [vmem:[%s2 + $0x70] sm:$0xff]
  %v70 = vld [vmem:[%s2 + $0x78] sm:$0xff]
  %72 = vset.pattern.permute.xlu0 0
  %73 = vperm.xlu0 %72, %v55
  %v74 = vpop.permute.xlu0 %73
  %77 = vset.pattern.permute.xlu0 0
  %78 = vperm.xlu0 %77, %v56
  %v79 = vpop.permute.xlu0 %78
  %82 = vset.pattern.permute.xlu0 0
  %83 = vperm.xlu0 %82, %v57
  %v84 = vpop.permute.xlu0 %83
  %87 = vset.pattern.permute.xlu0 0
  %88 = vperm.xlu0 %87, %v58
  %v89 = vpop.permute.xlu0 %88
  %92 = vset.pattern.permute.xlu0 0
  %93 = vperm.xlu0 %92, %v59
  %v94 = vpop.permute.xlu0 %93
  %97 = vset.pattern.permute.xlu0 0
  %98 = vperm.xlu0 %97, %v60
  %v99 = vpop.permute.xlu0 %98
  %102 = vset.pattern.permute.xlu0 0
  %103 = vperm.xlu0 %102, %v61
  %v104 = vpop.permute.xlu0 %103
  %107 = vset.pattern.permute.xlu0 0
  %108 = vperm.xlu0 %107, %v62
  %v109 = vpop.permute.xlu0 %108
  %112 = vset.pattern.permute.xlu0 0
  %113 = vperm.xlu0 %112, %v63
  %v114 = vpop.permute.xlu0 %113
  %117 = vset.pattern.permute.xlu0 0
  %118 = vperm.xlu0 %117, %v64
  %v119 = vpop.permute.xlu0 %118
  %122 = vset.pattern.permute.xlu0 0
  %123 = vperm.xlu0 %122, %v65
  %v124 = vpop.permute.xlu0 %123
  %127 = vset.pattern.permute.xlu0 0
  %128 = vperm.xlu0 %127, %v66
  %v129 = vpop.permute.xlu0 %128
  %132 = vset.pattern.permute.xlu0 0
  %133 = vperm.xlu0 %132, %v67
  %v134 = vpop.permute.xlu0 %133
  %137 = vset.pattern.permute.xlu0 0
  %138 = vperm.xlu0 %137, %v68
  %v139 = vpop.permute.xlu0 %138
  %142 = vset.pattern.permute.xlu0 0
  %143 = vperm.xlu0 %142, %v69
  %v144 = vpop.permute.xlu0 %143
  %147 = vset.pattern.permute.xlu0 0
  %148 = vperm.xlu0 %147, %v70
  %v149 = vpop.permute.xlu0 %148
  %v167 = vunpack.c.l.b16 %v39
  %v168 = vunpack.c.l.b16 %v40
  %v169 = vunpack.c.l.b16 %v41
  %v170 = vunpack.c.l.b16 %v42
  %v171 = vunpack.c.l.b16 %v43
  %v172 = vunpack.c.l.b16 %v44
  %v173 = vunpack.c.l.b16 %v45
  %v174 = vunpack.c.l.b16 %v46
  %v175 = vunpack.c.l.b16 %v47
  %v176 = vunpack.c.l.b16 %v48
  %v177 = vunpack.c.l.b16 %v49
  %v178 = vunpack.c.l.b16 %v50
  %v179 = vunpack.c.l.b16 %v51
  %v180 = vunpack.c.l.b16 %v52
  %v181 = vunpack.c.l.b16 %v53
  %v182 = vunpack.c.l.b16 %v54
  %v183 = vpack.c.b16 %v168, %v167
  %v184 = vpack.c.b16 %v170, %v169
  %v185 = vpack.c.b16 %v172, %v171
  %v186 = vpack.c.b16 %v174, %v173
  %v187 = vpack.c.b16 %v176, %v175
  %v188 = vpack.c.b16 %v178, %v177
  %v189 = vpack.c.b16 %v180, %v179
  %v190 = vpack.c.b16 %v182, %v181
  %vm191 = vcmask 130048
  %v193 = vsel %vm191, %v183, 0
  %v196 = vsel %vm191, %v184, 0
  %v199 = vsel %vm191, %v185, 0
  %v202 = vsel %vm191, %v186, 0
  %v205 = vsel %vm191, %v187, 0
  %v208 = vsel %vm191, %v188, 0
  %v211 = vsel %vm191, %v189, 0
  %v214 = vsel %vm191, %v190, 0
  %v217 = vsel %vm191, %v31, 0
  %v220 = vsel %vm191, %v32, 0
  %v223 = vsel %vm191, %v33, 0
  %v226 = vsel %vm191, %v34, 0
  %v229 = vsel %vm191, %v35, 0
  %v232 = vsel %vm191, %v36, 0
  %v235 = vsel %vm191, %v37, 0
  %v238 = vsel %vm191, %v38, 0
  %240 = vmatpush.bf16.xpose.msra.mxu0 %v238
  %241 = vmatpush.bf16.xpose.msra.mxu0 %v235
  %242 = vmatpush.bf16.xpose.msra.mxu0 %v232
  %243 = vmatpush.bf16.xpose.msra.mxu0 %v229
  %244 = vmatpush.bf16.xpose.msra.mxu0 %v226
  %245 = vmatpush.bf16.xpose.msra.mxu0 %v223
  %246 = vmatpush.bf16.xpose.msra.mxu0 %v220
  %247 = vmatpush.bf16.xpose.msra.mxu0 %v217
  %248 = vmatmul.bf16.gmra.mxu0 %v193
  %v249 = vpop.f32.mrf.mxu0
  %v250 = vadd.f32 %v74, %v249
  %v251 = vpop.f32.mrf.mxu0
  %v252 = vadd.f32 %v79, %v251
  %253 = vmatmul.bf16.gmra.mxu0 %v196
  %v254 = vpop.f32.mrf.mxu0
  %v255 = vadd.f32 %v84, %v254
  %v256 = vpop.f32.mrf.mxu0
  %v257 = vadd.f32 %v89, %v256
  %258 = vmatmul.bf16.gmra.mxu0 %v199
  %v259 = vpop.f32.mrf.mxu0
  %v260 = vadd.f32 %v94, %v259
  %v261 = vpop.f32.mrf.mxu0
  %v262 = vadd.f32 %v99, %v261
  %263 = vmatmul.bf16.gmra.mxu0 %v202
  %v264 = vpop.f32.mrf.mxu0
  %v265 = vadd.f32 %v104, %v264
  %v266 = vpop.f32.mrf.mxu0
  %v267 = vadd.f32 %v109, %v266
  %268 = vmatmul.bf16.gmra.mxu0 %v205
  %v269 = vpop.f32.mrf.mxu0
  %v270 = vadd.f32 %v114, %v269
  %v271 = vpop.f32.mrf.mxu0
  %v272 = vadd.f32 %v119, %v271
  %273 = vmatmul.bf16.gmra.mxu0 %v208
  %v274 = vpop.f32.mrf.mxu0
  %v275 = vadd.f32 %v124, %v274
  %v276 = vpop.f32.mrf.mxu0
  %v277 = vadd.f32 %v129, %v276
  %278 = vmatmul.bf16.gmra.mxu0 %v211
  %v279 = vpop.f32.mrf.mxu0
  %v280 = vadd.f32 %v134, %v279
  %v281 = vpop.f32.mrf.mxu0
  %v282 = vadd.f32 %v139, %v281
  %283 = vmatmul.bf16.gmra.mxu0 %v214
  %v284 = vpop.f32.mrf.mxu0
  %v285 = vadd.f32 %v144, %v284
  %v286 = vpop.f32.mrf.mxu0
  %v287 = vadd.f32 %v149, %v286
  %288 = vdwg.mxu0
  %v289 = vmax.f32 %v250, 0.0
  %v290 = vmax.f32 %v252, 0.0
  %v291 = vmax.f32 %v255, 0.0
  %v292 = vmax.f32 %v257, 0.0
  %v293 = vmax.f32 %v260, 0.0
  %v294 = vmax.f32 %v262, 0.0
  %v295 = vmax.f32 %v265, 0.0
  %v296 = vmax.f32 %v267, 0.0
  %v297 = vmax.f32 %v270, 0.0
  %v298 = vmax.f32 %v272, 0.0
  %v299 = vmax.f32 %v275, 0.0
  %v300 = vmax.f32 %v277, 0.0
  %v301 = vmax.f32 %v280, 0.0
  %v302 = vmax.f32 %v282, 0.0
  %v303 = vmax.f32 %v285, 0.0
  %v304 = vmax.f32 %v287, 0.0
  %v305 = vld [vmem:[%s1 + $0x40] sm:$0xf]
  %v306 = vld [vmem:[%s1 + $0x44] sm:$0xf]
  %v307 = vld [vmem:[%s1 + $0x48] sm:$0xf]
  %v308 = vld [vmem:[%s1 + $0x4c] sm:$0xf]
  %v309 = vld [vmem:[%s1 + $0x50] sm:$0xf]
  %v310 = vld [vmem:[%s1 + $0x54] sm:$0xf]
  %v311 = vld [vmem:[%s1 + $0x58] sm:$0xf]
  %v312 = vld [vmem:[%s1 + $0x5c] sm:$0xf]
  %v313 = vpack.c.bf16 %v290, %v289
  %v314 = vpack.c.bf16 %v292, %v291
  %v315 = vpack.c.bf16 %v294, %v293
  %v316 = vpack.c.bf16 %v296, %v295
  %v317 = vpack.c.bf16 %v298, %v297
  %v318 = vpack.c.bf16 %v300, %v299
  %v319 = vpack.c.bf16 %v302, %v301
  %v320 = vpack.c.bf16 %v304, %v303
  %v321 = vld [vmem:[%s2] sm:$0xff]
  %v322 = vld [vmem:[%s2 + $0x8] sm:$0xff]
  %v323 = vld [vmem:[%s2 + $0x10] sm:$0xff]
  %v324 = vld [vmem:[%s2 + $0x18] sm:$0xff]
  %v325 = vld [vmem:[%s2 + $0x20] sm:$0xff]
  %v326 = vld [vmem:[%s2 + $0x28] sm:$0xff]
  %v327 = vld [vmem:[%s2 + $0x30] sm:$0xff]
  %v328 = vld [vmem:[%s2 + $0x38] sm:$0xff]
  %330 = vset.pattern.permute.xlu0 1
  %331 = vperm.xlu0 %330, %v321
  %v332 = vpop.permute.xlu0 %331
  %335 = vset.pattern.permute.xlu0 1
  %336 = vperm.xlu0 %335, %v322
  %v337 = vpop.permute.xlu0 %336
  %340 = vset.pattern.permute.xlu0 1
  %341 = vperm.xlu0 %340, %v323
  %v342 = vpop.permute.xlu0 %341
  %345 = vset.pattern.permute.xlu0 1
  %346 = vperm.xlu0 %345, %v324
  %v347 = vpop.permute.xlu0 %346
  %350 = vset.pattern.permute.xlu0 1
  %351 = vperm.xlu0 %350, %v325
  %v352 = vpop.permute.xlu0 %351
  %355 = vset.pattern.permute.xlu0 1
  %356 = vperm.xlu0 %355, %v326
  %v357 = vpop.permute.xlu0 %356
  %360 = vset.pattern.permute.xlu0 1
  %361 = vperm.xlu0 %360, %v327
  %v362 = vpop.permute.xlu0 %361
  %365 = vset.pattern.permute.xlu0 1
  %366 = vperm.xlu0 %365, %v328
  %v367 = vpop.permute.xlu0 %366
  %v377 = vunpack.c.l.b16 %v305
  %v378 = vunpack.c.l.b16 %v306
  %v379 = vunpack.c.l.b16 %v307
  %v380 = vunpack.c.l.b16 %v308
  %v381 = vunpack.c.l.b16 %v309
  %v382 = vunpack.c.l.b16 %v310
  %v383 = vunpack.c.l.b16 %v311
  %v384 = vunpack.c.l.b16 %v312
  %v385 = vpack.c.b16 %v378, %v377
  %v386 = vpack.c.b16 %v380, %v379
  %v387 = vpack.c.b16 %v382, %v381
  %v388 = vpack.c.b16 %v384, %v383
  %393 = vmatpush.bf16.msra.mxu0 %v320
  %394 = vmatpush.bf16.msra.mxu0 %v319
  %395 = vmatpush.bf16.msra.mxu0 %v318
  %396 = vmatpush.bf16.msra.mxu0 %v317
  %397 = vmatpush.bf16.msra.mxu0 %v316
  %398 = vmatpush.bf16.msra.mxu0 %v315
  %399 = vmatpush.bf16.msra.mxu0 %v314
  %400 = vmatpush.bf16.msra.mxu0 %v313
  %401 = vmatmul.bf16.gmra.mxu0 %v385
  %v402 = vpop.f32.mrf.mxu0
  %v403 = vadd.f32 %v332, %v402
  %v404 = vpop.f32.mrf.mxu0
  %v405 = vadd.f32 %v337, %v404
  %406 = vmatmul.bf16.gmra.mxu0 %v386
  %v407 = vpop.f32.mrf.mxu0
  %v408 = vadd.f32 %v342, %v407
  %v409 = vpop.f32.mrf.mxu0
  %v410 = vadd.f32 %v347, %v409
  %411 = vmatmul.bf16.gmra.mxu0 %v387
  %v412 = vpop.f32.mrf.mxu0
  %v413 = vadd.f32 %v352, %v412
  %v414 = vpop.f32.mrf.mxu0
  %v415 = vadd.f32 %v357, %v414
  %416 = vmatmul.bf16.gmra.mxu0 %v388
  %v417 = vpop.f32.mrf.mxu0
  %v418 = vadd.f32 %v362, %v417
  %v419 = vpop.f32.mrf.mxu0
  %v420 = vadd.f32 %v367, %v419
  %421 = vdwg.mxu0
  %v422 = vmax.f32 %v403, 0.0
  %v423 = vmax.f32 %v405, 0.0
  %v424 = vmax.f32 %v408, 0.0
  %v425 = vmax.f32 %v410, 0.0
  %v426 = vmax.f32 %v413, 0.0
  %v427 = vmax.f32 %v415, 0.0
  %v428 = vmax.f32 %v418, 0.0
  %v429 = vmax.f32 %v420, 0.0
  %v430 = vld [vmem:[%s1 + $0x60] sm:$0xf]
  %v431 = vpack.c.bf16 %v423, %v422
  %v432 = vpack.c.bf16 %v425, %v424
  %v433 = vpack.c.bf16 %v427, %v426
  %v434 = vpack.c.bf16 %v429, %v428
  %v435 = vld [vmem:[%s2] sm:$0xff]
  %437 = vset.pattern.permute.xlu0 2
  %438 = vperm.xlu0 %437, %v435
  %v439 = vpop.permute.xlu0 %438
  %vm441 = vcmask 523264
  %v443 = vsel %vm441, %v430, 0
  %445 = vmatpush.bf16.msra.mxu0 0
  %446 = vmatpush.bf16.msra.mxu0 0
  %447 = vmatpush.bf16.msra.mxu0 0
  %448 = vmatpush.bf16.msra.mxu0 0
  %449 = vmatpush.bf16.msra.mxu0 %v434
  %450 = vmatpush.bf16.msra.mxu0 %v433
  %451 = vmatpush.bf16.msra.mxu0 %v432
  %452 = vmatpush.bf16.msra.mxu0 %v431
  %453 = vmatmul.bf16.gmra.mxu0 %v443
  %v454 = vpop.f32.mrf.mxu0
  %v455 = vadd.f32 %v439, %v454
  %v456 = vpop.f32.mrf.mxu0
  %457 = vdwg.mxu0
  %v458 = vmax.f32 %v455, 0.0
  %459 = vset.pattern.permute.xlu0 3
  %460 = vperm.xlu0 %459, %v435
  %v461 = vpop.permute.xlu0 %460
  %v463 = vmul.f32 %v458, %v461
  %v464 = vrot.slane %v463, 4
  %v465 = vadd.f32 %v463, %v464
  %v466 = vrot.slane %v465, 2
  %v467 = vadd.f32 %v465, %v466
  %v468 = vrot.slane %v467, 1
  %v469 = vadd.f32 %v467, %v468
  %v470 = vld [vmem:[%s2] sm:$0x1]
  %472 = vset.pattern.permute.xlu0 4
  %473 = vperm.xlu0 %472, %v470
  %v474 = vpop.permute.xlu0 %473
  %v476 = vadd.f32 %v469, %v474
  %v477 = vtanh.pop %v476
  %478 = vst [vmem:[%s3] sm:$0x1] %v477
  // Predicated region
  $region14: #{_forward_impl.1} parent=0 // pred_check
    _
  $region15: #{_forward_impl.1} parent=0 // pred_check_branch
    %480 = sbr.rel (0) target = $region17
  $region16: #{_forward_impl.1} parent=0 // pred_region
    _
  $region17: #{_forward_impl.1} parent=0 // pred_fallthru
    _
  // Predicated region
  $region18: #{_forward_impl.1} parent=0 // pred_check
    _
  $region19: #{_forward_impl.1} parent=0 // pred_check_branch
    %482 = sbr.rel (0) target = $region21
  $region20: #{_forward_impl.1} parent=0 // pred_region
    _
  $region21: #{_forward_impl.1} parent=0 // pred_fallthru
    _

</llo_original>
